<compile_context>
chip_gen: v7x
topology: tpu7x:2x2x1
jax: 0.10.0
libtpu: 0.0.40
codegen_flags: <defaults>
</compile_context>

<pallas_src>
import jax
import jax.numpy as jnp
from jax.experimental import pallas as pl
from jax.experimental.pallas import tpu as pltpu


def _fused_kernel(wt_ref, v1_ref, a_ref, b_ref, o_ref):
    # wt_ref : (K, N)        == linear.weight.permute(1, 0)
    # v1_ref : (1, N)        random row added twice to each B_t
    # a_ref  : (T, B, M, K)  stacked "activation" operands
    # b_ref  : (T, B, K, N)  stacked "scale" operands
    # o_ref  : (B, M, N)
    T, B, M, K = a_ref.shape
    wt = wt_ref[...]                      # (K, N)
    v1 = v1_ref[...]                      # (1, N)
    wtv = wt * (v1 + v1)                  # hoisted once: wt * 2*v1  -> (K, N)

    for bb in range(B):                   # tiny & static -> fully unrolled
        acc = None
        for t in range(T):
            scaled = wt * b_ref[t, bb] + wtv          # (K, N)
            a_tb = a_ref[t, bb]                       # (M, K)
            # VPU outer-product accumulation over K (K=2), unrolled: no MXU round-trip.
            for k in range(K):
                term = a_tb[:, k:k + 1] * scaled[k:k + 1, :]   # (M, N) broadcast FMA
                acc = term if acc is None else acc + term
        o_ref[bb] = acc.astype(o_ref.dtype)


def model_forward(x1, wt, v1, a_s, b_s):
    # x1 is accepted for signature parity with Model.forward but, like the PyTorch
    # module, it is never used.
    del x1
    T, B, M, K = a_s.shape
    N = wt.shape[1]

    vmem = lambda: pl.BlockSpec(memory_space=pltpu.MemorySpace.VMEM)

    out_bmn = pl.pallas_call(
        _fused_kernel,
        in_specs=[vmem(), vmem(), vmem(), vmem()],
        out_specs=vmem(),
        out_shape=jax.ShapeDtypeStruct((B, M, N), jnp.float32),
    )(wt, v1, a_s, b_s)

    # v9.permute(1, 2, 0): (B, M, N) -> (M, N, B).  Pure layout; absorbed by XLA.
    return jnp.transpose(out_bmn, (1, 2, 0))


if __name__ == "__main__":
    key = jax.random.PRNGKey(0)
    kW, k1, ka, kb, kx = jax.random.split(key, 5)

    IN_F, OUT_F = 2, 5          # nn.Linear(2, 5)
    B, M, T = 2, 8, 3           # small batch / rows / three mm terms

    # deterministic Linear init (uniform in +-1/sqrt(fan_in), like torch default)
    bound = 1.0 / (IN_F ** 0.5)
    W = jax.random.uniform(kW, (OUT_F, IN_F), jnp.float32, -bound, bound)
    WT = W.T                    # weight.permute(1, 0) -> (K, N)

    v1 = jax.random.normal(k1, (1, OUT_F), jnp.float32)
    a_s = jax.random.normal(ka, (T, B, M, IN_F), jnp.float32)     # stacked at producer
    b_s = jax.random.normal(kb, (T, B, IN_F, OUT_F), jnp.float32)
    x1 = jax.random.normal(kx, (B, IN_F), jnp.float32)            # unused, like original

    out = jax.block_until_ready(model_forward(x1, WT, v1, a_s, b_s))

    # pure-JAX reference check (HIGHEST precision so the f32 matmul path matches)
    ref = jnp.einsum('tbmk,tbkn->bmn', a_s, WT[None, None] * (b_s + 2.0 * v1),
                     precision=jax.lax.Precision.HIGHEST)
    ref = jnp.transpose(ref, (1, 2, 0))

    assert out.shape == (M, OUT_F, B), out.shape
    assert jnp.allclose(out, ref, atol=1e-5, rtol=1e-5)
    print("KERNEL_OK")
</pallas_src>

<mosaic_0001>
module attributes {stable_mosaic.version = 11 : i64} {
  func.func @_fused_kernel(%arg0: memref<2x5xf32, #tpu.memory_space<vmem>>, %arg1: memref<1x5xf32, #tpu.memory_space<vmem>>, %arg2: memref<3x2x8x2xf32, #tpu.memory_space<vmem>>, %arg3: memref<3x2x2x5xf32, #tpu.memory_space<vmem>>, %arg4: memref<2x8x5xf32, #tpu.memory_space<vmem>>) attributes {dimension_semantics = [], scalar_prefetch = 0 : i64, scratch_operands = 0 : i64, tpu.core_type = #tpu.core_type<tc>} {
    %c0 = arith.constant 0 : index
    %c0_0 = arith.constant 0 : index
    %0 = vector.load %arg0[%c0, %c0_0] : memref<2x5xf32, #tpu.memory_space<vmem>>, vector<2x5xf32>
    %c0_1 = arith.constant 0 : index
    %c0_2 = arith.constant 0 : index
    %1 = vector.load %arg1[%c0_1, %c0_2] : memref<1x5xf32, #tpu.memory_space<vmem>>, vector<1x5xf32>
    %2 = arith.addf %1, %1 : vector<1x5xf32>
    %3 = vector.broadcast %2 : vector<1x5xf32> to vector<2x5xf32>
    %4 = arith.mulf %0, %3 : vector<2x5xf32>
    %c0_3 = arith.constant 0 : index
    %c0_4 = arith.constant 0 : index
    %c0_5 = arith.constant 0 : index
    %c0_6 = arith.constant 0 : index
    %5 = vector.load %arg3[%c0_3, %c0_4, %c0_5, %c0_6] : memref<3x2x2x5xf32, #tpu.memory_space<vmem>>, vector<1x1x2x5xf32>
    %6 = vector.shape_cast %5 : vector<1x1x2x5xf32> to vector<2x5xf32>
    %7 = arith.mulf %0, %6 : vector<2x5xf32>
    %8 = arith.addf %7, %4 : vector<2x5xf32>
    %c0_7 = arith.constant 0 : index
    %c0_8 = arith.constant 0 : index
    %c0_9 = arith.constant 0 : index
    %c0_10 = arith.constant 0 : index
    %9 = vector.load %arg2[%c0_7, %c0_8, %c0_9, %c0_10] : memref<3x2x8x2xf32, #tpu.memory_space<vmem>>, vector<1x1x8x2xf32>
    %10 = vector.shape_cast %9 : vector<1x1x8x2xf32> to vector<8x2xf32>
    %11 = vector.extract_strided_slice %10 {offsets = [0, 0], sizes = [8, 1], strides = [1, 1]} : vector<8x2xf32> to vector<8x1xf32>
    %12 = vector.extract_strided_slice %8 {offsets = [0, 0], sizes = [1, 5], strides = [1, 1]} : vector<2x5xf32> to vector<1x5xf32>
    %13 = vector.broadcast %11 : vector<8x1xf32> to vector<8x5xf32>
    %14 = vector.broadcast %12 : vector<1x5xf32> to vector<8x5xf32>
    %15 = arith.mulf %13, %14 : vector<8x5xf32>
    %16 = vector.extract_strided_slice %10 {offsets = [0, 1], sizes = [8, 1], strides = [1, 1]} : vector<8x2xf32> to vector<8x1xf32>
    %17 = vector.extract_strided_slice %8 {offsets = [1, 0], sizes = [1, 5], strides = [1, 1]} : vector<2x5xf32> to vector<1x5xf32>
    %18 = vector.broadcast %16 : vector<8x1xf32> to vector<8x5xf32>
    %19 = vector.broadcast %17 : vector<1x5xf32> to vector<8x5xf32>
    %20 = arith.mulf %18, %19 : vector<8x5xf32>
    %21 = arith.addf %15, %20 : vector<8x5xf32>
    %c1 = arith.constant 1 : index
    %c0_11 = arith.constant 0 : index
    %c0_12 = arith.constant 0 : index
    %c0_13 = arith.constant 0 : index
    %22 = vector.load %arg3[%c1, %c0_11, %c0_12, %c0_13] : memref<3x2x2x5xf32, #tpu.memory_space<vmem>>, vector<1x1x2x5xf32>
    %23 = vector.shape_cast %22 : vector<1x1x2x5xf32> to vector<2x5xf32>
    %24 = arith.mulf %0, %23 : vector<2x5xf32>
    %25 = arith.addf %24, %4 : vector<2x5xf32>
    %c1_14 = arith.constant 1 : index
    %c0_15 = arith.constant 0 : index
    %c0_16 = arith.constant 0 : index
    %c0_17 = arith.constant 0 : index
    %26 = vector.load %arg2[%c1_14, %c0_15, %c0_16, %c0_17] : memref<3x2x8x2xf32, #tpu.memory_space<vmem>>, vector<1x1x8x2xf32>
    %27 = vector.shape_cast %26 : vector<1x1x8x2xf32> to vector<8x2xf32>
    %28 = vector.extract_strided_slice %27 {offsets = [0, 0], sizes = [8, 1], strides = [1, 1]} : vector<8x2xf32> to vector<8x1xf32>
    %29 = vector.extract_strided_slice %25 {offsets = [0, 0], sizes = [1, 5], strides = [1, 1]} : vector<2x5xf32> to vector<1x5xf32>
    %30 = vector.broadcast %28 : vector<8x1xf32> to vector<8x5xf32>
    %31 = vector.broadcast %29 : vector<1x5xf32> to vector<8x5xf32>
    %32 = arith.mulf %30, %31 : vector<8x5xf32>
    %33 = arith.addf %21, %32 : vector<8x5xf32>
    %34 = vector.extract_strided_slice %27 {offsets = [0, 1], sizes = [8, 1], strides = [1, 1]} : vector<8x2xf32> to vector<8x1xf32>
    %35 = vector.extract_strided_slice %25 {offsets = [1, 0], sizes = [1, 5], strides = [1, 1]} : vector<2x5xf32> to vector<1x5xf32>
    %36 = vector.broadcast %34 : vector<8x1xf32> to vector<8x5xf32>
    %37 = vector.broadcast %35 : vector<1x5xf32> to vector<8x5xf32>
    %38 = arith.mulf %36, %37 : vector<8x5xf32>
    %39 = arith.addf %33, %38 : vector<8x5xf32>
    %c2 = arith.constant 2 : index
    %c0_18 = arith.constant 0 : index
    %c0_19 = arith.constant 0 : index
    %c0_20 = arith.constant 0 : index
    %40 = vector.load %arg3[%c2, %c0_18, %c0_19, %c0_20] : memref<3x2x2x5xf32, #tpu.memory_space<vmem>>, vector<1x1x2x5xf32>
    %41 = vector.shape_cast %40 : vector<1x1x2x5xf32> to vector<2x5xf32>
    %42 = arith.mulf %0, %41 : vector<2x5xf32>
    %43 = arith.addf %42, %4 : vector<2x5xf32>
    %c2_21 = arith.constant 2 : index
    %c0_22 = arith.constant 0 : index
    %c0_23 = arith.constant 0 : index
    %c0_24 = arith.constant 0 : index
    %44 = vector.load %arg2[%c2_21, %c0_22, %c0_23, %c0_24] : memref<3x2x8x2xf32, #tpu.memory_space<vmem>>, vector<1x1x8x2xf32>
    %45 = vector.shape_cast %44 : vector<1x1x8x2xf32> to vector<8x2xf32>
    %46 = vector.extract_strided_slice %45 {offsets = [0, 0], sizes = [8, 1], strides = [1, 1]} : vector<8x2xf32> to vector<8x1xf32>
    %47 = vector.extract_strided_slice %43 {offsets = [0, 0], sizes = [1, 5], strides = [1, 1]} : vector<2x5xf32> to vector<1x5xf32>
    %48 = vector.broadcast %46 : vector<8x1xf32> to vector<8x5xf32>
    %49 = vector.broadcast %47 : vector<1x5xf32> to vector<8x5xf32>
    %50 = arith.mulf %48, %49 : vector<8x5xf32>
    %51 = arith.addf %39, %50 : vector<8x5xf32>
    %52 = vector.extract_strided_slice %45 {offsets = [0, 1], sizes = [8, 1], strides = [1, 1]} : vector<8x2xf32> to vector<8x1xf32>
    %53 = vector.extract_strided_slice %43 {offsets = [1, 0], sizes = [1, 5], strides = [1, 1]} : vector<2x5xf32> to vector<1x5xf32>
    %54 = vector.broadcast %52 : vector<8x1xf32> to vector<8x5xf32>
    %55 = vector.broadcast %53 : vector<1x5xf32> to vector<8x5xf32>
    %56 = arith.mulf %54, %55 : vector<8x5xf32>
    %57 = arith.addf %51, %56 : vector<8x5xf32>
    %c0_25 = arith.constant 0 : index
    %c0_26 = arith.constant 0 : index
    %c0_27 = arith.constant 0 : index
    %58 = vector.load %arg4[%c0_25, %c0_26, %c0_27] : memref<2x8x5xf32, #tpu.memory_space<vmem>>, vector<1x8x5xf32>
    %59 = vector.shape_cast %58 : vector<1x8x5xf32> to vector<8x5xf32>
    %60 = vector.shape_cast %57 : vector<8x5xf32> to vector<1x8x5xf32>
    tpu.vector_store %arg4[%c0_25, %c0_26, %c0_27], %60 {strides = array<i32>} : memref<2x8x5xf32, #tpu.memory_space<vmem>>, vector<1x8x5xf32>,
    %c0_28 = arith.constant 0 : index
    %c1_29 = arith.constant 1 : index
    %c0_30 = arith.constant 0 : index
    %c0_31 = arith.constant 0 : index
    %61 = vector.load %arg3[%c0_28, %c1_29, %c0_30, %c0_31] : memref<3x2x2x5xf32, #tpu.memory_space<vmem>>, vector<1x1x2x5xf32>
    %62 = vector.shape_cast %61 : vector<1x1x2x5xf32> to vector<2x5xf32>
    %63 = arith.mulf %0, %62 : vector<2x5xf32>
    %64 = arith.addf %63, %4 : vector<2x5xf32>
    %c0_32 = arith.constant 0 : index
    %c1_33 = arith.constant 1 : index
    %c0_34 = arith.constant 0 : index
    %c0_35 = arith.constant 0 : index
    %65 = vector.load %arg2[%c0_32, %c1_33, %c0_34, %c0_35] : memref<3x2x8x2xf32, #tpu.memory_space<vmem>>, vector<1x1x8x2xf32>
    %66 = vector.shape_cast %65 : vector<1x1x8x2xf32> to vector<8x2xf32>
    %67 = vector.extract_strided_slice %66 {offsets = [0, 0], sizes = [8, 1], strides = [1, 1]} : vector<8x2xf32> to vector<8x1xf32>
    %68 = vector.extract_strided_slice %64 {offsets = [0, 0], sizes = [1, 5], strides = [1, 1]} : vector<2x5xf32> to vector<1x5xf32>
    %69 = vector.broadcast %67 : vector<8x1xf32> to vector<8x5xf32>
    %70 = vector.broadcast %68 : vector<1x5xf32> to vector<8x5xf32>
    %71 = arith.mulf %69, %70 : vector<8x5xf32>
    %72 = vector.extract_strided_slice %66 {offsets = [0, 1], sizes = [8, 1], strides = [1, 1]} : vector<8x2xf32> to vector<8x1xf32>
    %73 = vector.extract_strided_slice %64 {offsets = [1, 0], sizes = [1, 5], strides = [1, 1]} : vector<2x5xf32> to vector<1x5xf32>
    %74 = vector.broadcast %72 : vector<8x1xf32> to vector<8x5xf32>
    %75 = vector.broadcast %73 : vector<1x5xf32> to vector<8x5xf32>
    %76 = arith.mulf %74, %75 : vector<8x5xf32>
    %77 = arith.addf %71, %76 : vector<8x5xf32>
    %c1_36 = arith.constant 1 : index
    %c1_37 = arith.constant 1 : index
    %c0_38 = arith.constant 0 : index
    %c0_39 = arith.constant 0 : index
    %78 = vector.load %arg3[%c1_36, %c1_37, %c0_38, %c0_39] : memref<3x2x2x5xf32, #tpu.memory_space<vmem>>, vector<1x1x2x5xf32>
    %79 = vector.shape_cast %78 : vector<1x1x2x5xf32> to vector<2x5xf32>
    %80 = arith.mulf %0, %79 : vector<2x5xf32>
    %81 = arith.addf %80, %4 : vector<2x5xf32>
    %c1_40 = arith.constant 1 : index
    %c1_41 = arith.constant 1 : index
    %c0_42 = arith.constant 0 : index
    %c0_43 = arith.constant 0 : index
    %82 = vector.load %arg2[%c1_40, %c1_41, %c0_42, %c0_43] : memref<3x2x8x2xf32, #tpu.memory_space<vmem>>, vector<1x1x8x2xf32>
    %83 = vector.shape_cast %82 : vector<1x1x8x2xf32> to vector<8x2xf32>
    %84 = vector.extract_strided_slice %83 {offsets = [0, 0], sizes = [8, 1], strides = [1, 1]} : vector<8x2xf32> to vector<8x1xf32>
    %85 = vector.extract_strided_slice %81 {offsets = [0, 0], sizes = [1, 5], strides = [1, 1]} : vector<2x5xf32> to vector<1x5xf32>
    %86 = vector.broadcast %84 : vector<8x1xf32> to vector<8x5xf32>
    %87 = vector.broadcast %85 : vector<1x5xf32> to vector<8x5xf32>
    %88 = arith.mulf %86, %87 : vector<8x5xf32>
    %89 = arith.addf %77, %88 : vector<8x5xf32>
    %90 = vector.extract_strided_slice %83 {offsets = [0, 1], sizes = [8, 1], strides = [1, 1]} : vector<8x2xf32> to vector<8x1xf32>
    %91 = vector.extract_strided_slice %81 {offsets = [1, 0], sizes = [1, 5], strides = [1, 1]} : vector<2x5xf32> to vector<1x5xf32>
    %92 = vector.broadcast %90 : vector<8x1xf32> to vector<8x5xf32>
    %93 = vector.broadcast %91 : vector<1x5xf32> to vector<8x5xf32>
    %94 = arith.mulf %92, %93 : vector<8x5xf32>
    %95 = arith.addf %89, %94 : vector<8x5xf32>
    %c2_44 = arith.constant 2 : index
    %c1_45 = arith.constant 1 : index
    %c0_46 = arith.constant 0 : index
    %c0_47 = arith.constant 0 : index
    %96 = vector.load %arg3[%c2_44, %c1_45, %c0_46, %c0_47] : memref<3x2x2x5xf32, #tpu.memory_space<vmem>>, vector<1x1x2x5xf32>
    %97 = vector.shape_cast %96 : vector<1x1x2x5xf32> to vector<2x5xf32>
    %98 = arith.mulf %0, %97 : vector<2x5xf32>
    %99 = arith.addf %98, %4 : vector<2x5xf32>
    %c2_48 = arith.constant 2 : index
    %c1_49 = arith.constant 1 : index
    %c0_50 = arith.constant 0 : index
    %c0_51 = arith.constant 0 : index
    %100 = vector.load %arg2[%c2_48, %c1_49, %c0_50, %c0_51] : memref<3x2x8x2xf32, #tpu.memory_space<vmem>>, vector<1x1x8x2xf32>
    %101 = vector.shape_cast %100 : vector<1x1x8x2xf32> to vector<8x2xf32>
    %102 = vector.extract_strided_slice %101 {offsets = [0, 0], sizes = [8, 1], strides = [1, 1]} : vector<8x2xf32> to vector<8x1xf32>
    %103 = vector.extract_strided_slice %99 {offsets = [0, 0], sizes = [1, 5], strides = [1, 1]} : vector<2x5xf32> to vector<1x5xf32>
    %104 = vector.broadcast %102 : vector<8x1xf32> to vector<8x5xf32>
    %105 = vector.broadcast %103 : vector<1x5xf32> to vector<8x5xf32>
    %106 = arith.mulf %104, %105 : vector<8x5xf32>
    %107 = arith.addf %95, %106 : vector<8x5xf32>
    %108 = vector.extract_strided_slice %101 {offsets = [0, 1], sizes = [8, 1], strides = [1, 1]} : vector<8x2xf32> to vector<8x1xf32>
    %109 = vector.extract_strided_slice %99 {offsets = [1, 0], sizes = [1, 5], strides = [1, 1]} : vector<2x5xf32> to vector<1x5xf32>
    %110 = vector.broadcast %108 : vector<8x1xf32> to vector<8x5xf32>
    %111 = vector.broadcast %109 : vector<1x5xf32> to vector<8x5xf32>
    %112 = arith.mulf %110, %111 : vector<8x5xf32>
    %113 = arith.addf %107, %112 : vector<8x5xf32>
    %c1_52 = arith.constant 1 : index
    %c0_53 = arith.constant 0 : index
    %c0_54 = arith.constant 0 : index
    %114 = vector.load %arg4[%c1_52, %c0_53, %c0_54] : memref<2x8x5xf32, #tpu.memory_space<vmem>>, vector<1x8x5xf32>
    %115 = vector.shape_cast %114 : vector<1x8x5xf32> to vector<8x5xf32>
    %116 = vector.shape_cast %113 : vector<8x5xf32> to vector<1x8x5xf32>
    tpu.vector_store %arg4[%c1_52, %c0_53, %c0_54], %116 {strides = array<i32>} : memref<2x8x5xf32, #tpu.memory_space<vmem>>, vector<1x8x5xf32>,
    return
  }
}

</mosaic_0001>

<llo_original>
// kernel: tpu_custom_call.1
$region0: #{tpu_custom_call.1}
  #allocation0 [shape = 'u32[]', space=smem, size = 0x4, offset = 0x4, fixed_abs, tag = 'smem constant byte address 0x4 - core index']
  #allocation1 [shape = 'u32[144,128]{1,0:T(1,128)}', space=vmem, size = 0x12000, scoped, tag = 'internal scratch']
  %s0 = inlined_call_operand.vmem [shape: f32[2,5], index: 0, kind: input, shape index: {}]
  %s1 = inlined_call_operand.vmem [shape: f32[1,5], index: 1, kind: input, shape index: {}]
  %s2 = inlined_call_operand.vmem [shape: f32[3,2,8,2], index: 2, kind: input, shape index: {}]
  %s3 = inlined_call_operand.vmem [shape: f32[3,2,2,5], index: 3, kind: input, shape index: {}]
  %s4 = inlined_call_operand.vmem [shape: f32[2,8,5], index: 4, kind: output, shape index: {}]
  %s5 = sld [smem:[#allocation0]]
  $region26: #{tpu_custom_call.1} parent=0
    _
  %s7 = ssub.s32 1, %s5
  %s8 = scalar_select 0, %s7, %s5
  // Predicated region
  $region2: #{tpu_custom_call.1} parent=0 // pred_check
    _
  $region3: #{tpu_custom_call.1} parent=0 // pred_check_branch
    %10 = sbr.rel (0) target = $region5
  $region4: #{tpu_custom_call.1} parent=0 // pred_region
    _
  $region5: #{tpu_custom_call.1} parent=0 // pred_fallthru
    _
  // Predicated region
  $region6: #{tpu_custom_call.1} parent=0 // pred_check
    _
  $region7: #{tpu_custom_call.1} parent=0 // pred_check_branch
    %12 = sbr.rel (0) target = $region9
  $region8: #{tpu_custom_call.1} parent=0 // pred_region
    _
  $region9: #{tpu_custom_call.1} parent=0 // pred_fallthru
    _
  // Predicated region
  $region10: #{tpu_custom_call.1} parent=0 // pred_check
    _
  $region11: #{tpu_custom_call.1} parent=0 // pred_check_branch
    %14 = sbr.rel (0) target = $region13
  $region12: #{tpu_custom_call.1} parent=0 // pred_region
    _
  $region13: #{tpu_custom_call.1} parent=0 // pred_fallthru
    _
  // Predicated region
  $region14: #{tpu_custom_call.1} parent=0 // pred_check
    _
  $region15: #{tpu_custom_call.1} parent=0 // pred_check_branch
    %16 = sbr.rel (0) target = $region17
  $region16: #{tpu_custom_call.1} parent=0 // pred_region
    _
  $region17: #{tpu_custom_call.1} parent=0 // pred_fallthru
    _
  %v17 = vld [vmem:[%s0] sm:$0x3]
  %v18 = vld [vmem:[%s1] sm:$0x1]
  %v19 = vadd.f32 %v18, %v18
  %v21 = vlaneseq
  %v22 = vshrl.u32 %v21, 7
  %v23 = vsub.s32 0, %v22
  %v24 = vrot.slane %v19, %v23
  %v26 = vmul.f32 %v17, %v24
  %v27 = vld [vmem:[%s3] sm:$0x3]
  %v28 = vmul.f32 %v17, %v27
  %v29 = vadd.f32 %v28, %v26
  %v30 = vld [vmem:[%s2] sm:$0xff]
  %32 = vset.pattern.permute.xlu0 0
  %33 = vperm.xlu0 %32, %v30
  %v34 = vpop.permute.xlu0 %33
  %v36 = vlaneseq
  %v37 = vshrl.u32 %v36, 7
  %v38 = vsub.s32 0, %v37
  %v39 = vrot.slane %v29, %v38
  %v40 = vmul.f32 %v34, %v39
  %41 = vset.pattern.permute.xlu0 1
  %42 = vperm.xlu0 %41, %v30
  %v43 = vpop.permute.xlu0 %42
  %v45 = vlaneseq
  %v46 = vshrl.u32 %v45, 7
  %v47 = vsub.s32 1, %v46
  %v48 = vrot.slane %v29, %v47
  %v49 = vmul.f32 %v43, %v48
  %v50 = vadd.f32 %v40, %v49
  %s51 = scalar_lea.vmem %s3, 4
  %v52 = vld [vmem:[%s51] sm:$0x3]
  %v53 = vmul.f32 %v17, %v52
  %v54 = vadd.f32 %v53, %v26
  %s55 = scalar_lea.vmem %s2, 16
  %v56 = vld [vmem:[%s55] sm:$0xff]
  %58 = vset.pattern.permute.xlu0 0
  %59 = vperm.xlu0 %58, %v56
  %v60 = vpop.permute.xlu0 %59
  %v62 = vlaneseq
  %v63 = vshrl.u32 %v62, 7
  %v64 = vsub.s32 0, %v63
  %v65 = vrot.slane %v54, %v64
  %v66 = vmul.f32 %v60, %v65
  %v67 = vadd.f32 %v50, %v66
  %68 = vset.pattern.permute.xlu0 1
  %69 = vperm.xlu0 %68, %v56
  %v70 = vpop.permute.xlu0 %69
  %v72 = vlaneseq
  %v73 = vshrl.u32 %v72, 7
  %v74 = vsub.s32 1, %v73
  %v75 = vrot.slane %v54, %v74
  %v76 = vmul.f32 %v70, %v75
  %v77 = vadd.f32 %v67, %v76
  %s78 = scalar_lea.vmem %s3, 8
  %v79 = vld [vmem:[%s78] sm:$0x3]
  %v80 = vmul.f32 %v17, %v79
  %v81 = vadd.f32 %v80, %v26
  %s82 = scalar_lea.vmem %s2, 32
  %v83 = vld [vmem:[%s82] sm:$0xff]
  %85 = vset.pattern.permute.xlu0 0
  %86 = vperm.xlu0 %85, %v83
  %v87 = vpop.permute.xlu0 %86
  %v89 = vlaneseq
  %v90 = vshrl.u32 %v89, 7
  %v91 = vsub.s32 0, %v90
  %v92 = vrot.slane %v81, %v91
  %v93 = vmul.f32 %v87, %v92
  %v94 = vadd.f32 %v77, %v93
  %95 = vset.pattern.permute.xlu0 1
  %96 = vperm.xlu0 %95, %v83
  %v97 = vpop.permute.xlu0 %96
  %v99 = vlaneseq
  %v100 = vshrl.u32 %v99, 7
  %v101 = vsub.s32 1, %v100
  %v102 = vrot.slane %v81, %v101
  %v103 = vmul.f32 %v97, %v102
  %v104 = vadd.f32 %v94, %v103
  %vm105 = vcmask 39936
  %106 = vst.msk [vmem:[%s4] sm:$0xff] %vm105, %v104
  %s107 = scalar_lea.vmem %s3, 2
  %v108 = vld [vmem:[%s107] sm:$0x3]
  %v109 = vmul.f32 %v17, %v108
  %v110 = vadd.f32 %v109, %v26
  %s111 = scalar_lea.vmem %s2, 8
  %v112 = vld [vmem:[%s111] sm:$0xff]
  %114 = vset.pattern.permute.xlu0 0
  %115 = vperm.xlu0 %114, %v112
  %v116 = vpop.permute.xlu0 %115
  %v118 = vlaneseq
  %v119 = vshrl.u32 %v118, 7
  %v120 = vsub.s32 0, %v119
  %v121 = vrot.slane %v110, %v120
  %v122 = vmul.f32 %v116, %v121
  %123 = vset.pattern.permute.xlu0 1
  %124 = vperm.xlu0 %123, %v112
  %v125 = vpop.permute.xlu0 %124
  %v127 = vlaneseq
  %v128 = vshrl.u32 %v127, 7
  %v129 = vsub.s32 1, %v128
  %v130 = vrot.slane %v110, %v129
  %v131 = vmul.f32 %v125, %v130
  %v132 = vadd.f32 %v122, %v131
  %s133 = scalar_lea.vmem %s3, 6
  %v134 = vld [vmem:[%s133] sm:$0x3]
  %v135 = vmul.f32 %v17, %v134
  %v136 = vadd.f32 %v135, %v26
  %s137 = scalar_lea.vmem %s2, 24
  %v138 = vld [vmem:[%s137] sm:$0xff]
  %140 = vset.pattern.permute.xlu0 0
  %141 = vperm.xlu0 %140, %v138
  %v142 = vpop.permute.xlu0 %141
  %v144 = vlaneseq
  %v145 = vshrl.u32 %v144, 7
  %v146 = vsub.s32 0, %v145
  %v147 = vrot.slane %v136, %v146
  %v148 = vmul.f32 %v142, %v147
  %v149 = vadd.f32 %v132, %v148
  %150 = vset.pattern.permute.xlu0 1
  %151 = vperm.xlu0 %150, %v138
  %v152 = vpop.permute.xlu0 %151
  %v154 = vlaneseq
  %v155 = vshrl.u32 %v154, 7
  %v156 = vsub.s32 1, %v155
  %v157 = vrot.slane %v136, %v156
  %v158 = vmul.f32 %v152, %v157
  %v159 = vadd.f32 %v149, %v158
  %s160 = scalar_lea.vmem %s3, 10
  %v161 = vld [vmem:[%s160] sm:$0x3]
  %v162 = vmul.f32 %v17, %v161
  %v163 = vadd.f32 %v162, %v26
  %s164 = scalar_lea.vmem %s2, 40
  %v165 = vld [vmem:[%s164] sm:$0xff]
  %167 = vset.pattern.permute.xlu0 0
  %168 = vperm.xlu0 %167, %v165
  %v169 = vpop.permute.xlu0 %168
  %v171 = vlaneseq
  %v172 = vshrl.u32 %v171, 7
  %v173 = vsub.s32 0, %v172
  %v174 = vrot.slane %v163, %v173
  %v175 = vmul.f32 %v169, %v174
  %v176 = vadd.f32 %v159, %v175
  %177 = vset.pattern.permute.xlu0 1
  %178 = vperm.xlu0 %177, %v165
  %v179 = vpop.permute.xlu0 %178
  %v181 = vlaneseq
  %v182 = vshrl.u32 %v181, 7
  %v183 = vsub.s32 1, %v182
  %v184 = vrot.slane %v163, %v183
  %v185 = vmul.f32 %v179, %v184
  %v186 = vadd.f32 %v176, %v185
  %s187 = scalar_lea.vmem %s4, 8
  %188 = vst.msk [vmem:[%s187] sm:$0xff] %vm105, %v186
  // Predicated region
  $region18: #{tpu_custom_call.1} parent=0 // pred_check
    _
  $region19: #{tpu_custom_call.1} parent=0 // pred_check_branch
    %190 = sbr.rel (0) target = $region21
  $region20: #{tpu_custom_call.1} parent=0 // pred_region
    _
  $region21: #{tpu_custom_call.1} parent=0 // pred_fallthru
    _
  // Predicated region
  $region22: #{tpu_custom_call.1} parent=0 // pred_check
    _
  $region23: #{tpu_custom_call.1} parent=0 // pred_check_branch
    %192 = sbr.rel (0) target = $region25
  $region24: #{tpu_custom_call.1} parent=0 // pred_region
    _
  $region25: #{tpu_custom_call.1} parent=0 // pred_fallthru
    _

</llo_original>
